<compile_context>
chip_gen: v5e
topology: v5e:2x2
jax: 0.10.0
libtpu: 0.0.40
codegen_flags: <defaults>
</compile_context>

<pallas_src>
import jax
import jax.numpy as jnp
import numpy as np
from jax.experimental import pallas as pl
from jax.experimental.pallas import tpu as pltpu


# --------------------------------------------------------------------------- #
# helpers
# --------------------------------------------------------------------------- #
def _round_up(x, m):
    return (x + m - 1) // m * m


def _pack_w_ih(w_ih, H, Hp, dt):
    """(3H, I) -> (I, 3*Hp), gate-blocked along last axis, zero padded."""
    I = w_ih.shape[1]
    w3 = jnp.asarray(w_ih, jnp.float32).reshape(3, H, I)
    w3 = jnp.pad(w3, ((0, 0), (0, Hp - H), (0, 0)))
    return jnp.transpose(w3, (2, 0, 1)).reshape(I, 3 * Hp).astype(dt)


def _pack_w_hh(w_hh, H, Hp, dt):
    """(3H, H) -> (Hp, 3*Hp), gate-blocked, zero padded on both dims."""
    w3 = jnp.asarray(w_hh, jnp.float32).reshape(3, H, H)
    w3 = jnp.pad(w3, ((0, 0), (0, Hp - H), (0, Hp - H)))
    return jnp.transpose(w3, (2, 0, 1)).reshape(Hp, 3 * Hp).astype(dt)


def _const_spec(block_shape, index_map, single_buffer):
    """BlockSpec for a VMEM-resident block; single-buffered when supported."""
    if single_buffer:
        return pl.BlockSpec(block_shape, index_map, pipeline_mode=pl.Buffered(1))
    return pl.BlockSpec(block_shape, index_map)


def _pick_tile_m(rows, target):
    """Largest multiple-of-8 divisor of `rows` that is <= target (rows is mult of 8)."""
    if rows <= target:
        return rows
    t = (target // 8) * 8
    while t >= 8:
        if rows % t == 0:
            return t
        t -= 8
    return 8


# --------------------------------------------------------------------------- #
# kernel 1: time-parallel input projection  Gi = x @ W_ih^T + bias
# --------------------------------------------------------------------------- #
def _proj_kernel(x_ref, wih_ref, bi_ref, gi_ref):
    acc = jnp.dot(x_ref[...], wih_ref[...], preferred_element_type=jnp.float32)
    gi_ref[...] = (acc + bi_ref[...]).astype(gi_ref.dtype)


# --------------------------------------------------------------------------- #
# kernel 2: sequential recurrence (per time block, per batch tile)
# --------------------------------------------------------------------------- #
def _make_rec_kernel(T_BLK, Bt, Hp, compute_dtype, unroll):
    def _rec_kernel(gi_ref, whh_ref, bhn_ref, h0_ref, out_ref, h_scratch):
        @pl.when(pl.program_id(1) == 0)          # first time block of this batch tile
        def _():
            h_scratch[...] = h0_ref[...]

        # hoist the (small) n-gate bias broadcast out of the per-step loop
        bhn_b = jnp.broadcast_to(bhn_ref[...], (Bt, Hp))

        def step(t, h):
            gi_t = gi_ref[t].astype(jnp.float32)                       # (Bt, 3Hp)
            gh = jnp.dot(h.astype(compute_dtype), whh_ref[...],
                         preferred_element_type=jnp.float32)           # (Bt, 3Hp)
            # lane-dense gate slices (Hp is a multiple of 128)
            i_r, i_z, i_n = gi_t[:, :Hp], gi_t[:, Hp:2 * Hp], gi_t[:, 2 * Hp:]
            h_r, h_z = gh[:, :Hp], gh[:, Hp:2 * Hp]
            h_n = gh[:, 2 * Hp:] + bhn_b                               # only b_hn here
            r = jax.nn.sigmoid(i_r + h_r)
            z = jax.nn.sigmoid(i_z + h_z)
            n = jnp.tanh(i_n + r * h_n)
            h_new = (1.0 - z) * n + z * h
            out_ref[t] = h_new.astype(out_ref.dtype)
            return h_new

        h_fin = jax.lax.fori_loop(0, T_BLK, step, h_scratch[...], unroll=unroll)
        h_scratch[...] = h_fin

    return _rec_kernel


# --------------------------------------------------------------------------- #
# wrapper
# --------------------------------------------------------------------------- #
def gru_forward(x, h0, w_ih, w_hh, b_ih, b_hh, *, compute_dtype=jnp.bfloat16):
    """x: (S, B, I), h0: (1, B, H), w_ih: (3H, I), w_hh: (3H, H), b_*: (3H,)."""
    S, B, I = x.shape
    H = h0.shape[-1]

    # ---- generation-aware VMEM budget ----
    try:
        vmem_cap = int(pltpu.get_tpu_info().vmem_capacity_bytes)
    except Exception:
        vmem_cap = 64 * 1024 * 1024            # conservative (v7x per-TC)
    vmem_limit = int(vmem_cap * 0.85)          # leave headroom for compiler scratch

    Hp = _round_up(max(H, 128), 128)           # lane-dense gate blocks
    # batch padding; pad to 16 when we are going to split across 2 batch tiles
    if B >= 256:
        Bp = _round_up(B, 16)
        n_bt, Bt = 2, _round_up(B, 16) // 2    # dual-TC (v7x) batch split
    else:
        Bp = _round_up(B, 8)
        n_bt, Bt = 1, _round_up(B, 8)

    cd = jnp.dtype(compute_dtype).itemsize

    # ---- time block from VMEM budget (conservative: weights double-buffered) ----
    whh_bytes = Hp * 3 * Hp * cd
    fixed = 2 * whh_bytes + 2 * (Bt * Hp * 4) + (Bt * Hp * 4) + 8 * Hp * 4
    per_t = 2 * (Bt * 3 * Hp * cd) + 2 * (Bt * Hp * cd)        # Gi + out, double-buffered
    t_budget = max(1, (vmem_limit - fixed) // per_t)
    t_cap = int(max(1, min(32, t_budget)))
    # prefer an exact divisor of S; otherwise allow padding S with <=12.5% waste
    best_div = next((t for t in range(t_cap, 0, -1) if S % t == 0), 1)
    best_pad = next((t for t in range(t_cap, 0, -1) if ((-S) % t) * 8 <= S), 1)
    T_BLK = best_div if best_div * 5 >= best_pad * 4 else best_pad
    Sp = _round_up(S, T_BLK)
    n_blk = Sp // T_BLK
    # bound vreg pressure at large hidden sizes: partial unroll
    unroll = T_BLK if Hp <= 512 else min(T_BLK, 8)

    # ---- weight / bias prep (once, plain JAX) ----
    wih_t = _pack_w_ih(w_ih, H, Hp, compute_dtype)       # (I, 3Hp)   bf16
    whh_t = _pack_w_hh(w_hh, H, Hp, compute_dtype)       # (Hp, 3Hp)  bf16
    b_ih3 = jnp.asarray(b_ih, jnp.float32).reshape(3, H)
    b_hh3 = jnp.asarray(b_hh, jnp.float32).reshape(3, H)
    # fold b_hr / b_hz into the projection bias; only b_hn stays in the recurrence
    bi3 = jnp.stack([b_ih3[0] + b_hh3[0], b_ih3[1] + b_hh3[1], b_ih3[2]], 0)
    bi = jnp.pad(bi3, ((0, 0), (0, Hp - H))).reshape(1, 3 * Hp)        # (1, 3Hp) f32
    bhn = jnp.pad(b_hh3[2], (0, Hp - H)).reshape(1, Hp)                # (1, Hp)  f32

    # ---- single-pass pad + cast of x (no extra f32 HBM copy) ----
    x_p = jnp.pad(x, ((0, Sp - S), (0, Bp - B), (0, 0))).astype(compute_dtype)
    x2 = x_p.reshape(Sp * Bp, I)
    rows_total = Sp * Bp

    # ---- projection row tiling, decoupled from T_BLK (target ~512 rows) ----
    def _fits_proj(tile_m):
        cost = (2 * tile_m * I * cd + 2 * tile_m * 3 * Hp * cd
                + 2 * I * 3 * Hp * cd + 2 * 8 * 3 * Hp * 4)
        return cost <= vmem_limit

    target = 512
    while target > 8 and not _fits_proj(min(target, rows_total)):
        target //= 2
    tile_m = _pick_tile_m(rows_total, target)

    # ---- time-parallel input projection (parallel grid, shardable across TCs) ----
    def _proj_call(single_buffer):
        return pl.pallas_call(
            _proj_kernel,
            out_shape=jax.ShapeDtypeStruct((rows_total, 3 * Hp), compute_dtype),
            grid_spec=pltpu.PrefetchScalarGridSpec(
                num_scalar_prefetch=0,
                grid=(rows_total // tile_m,),
                in_specs=[
                    pl.BlockSpec((tile_m, I), lambda m: (m, 0)),             # x rows
                    _const_spec((I, 3 * Hp), lambda m: (0, 0), single_buffer),   # W_ih^T
                    _const_spec((1, 3 * Hp), lambda m: (0, 0), single_buffer),   # bias
                ],
                out_specs=pl.BlockSpec((tile_m, 3 * Hp), lambda m: (m, 0)),
            ),
            compiler_params=pltpu.CompilerParams(
                dimension_semantics=("parallel",),
                vmem_limit_bytes=vmem_limit),
        )

    try:
        gi = _proj_call(True)(x2, wih_t, bi)
    except Exception:   # pipeline_mode=Buffered(1) unsupported -> default buffering
        gi = _proj_call(False)(x2, wih_t, bi)
    gi = gi.reshape(Sp, Bp, 3 * Hp)

    # ---- initial hidden state (padded, f32) ----
    h0_p = jnp.zeros((Bp, Hp), jnp.float32).at[:B, :H].set(h0[0].astype(jnp.float32))

    # ---- sequential recurrence (batch tiles parallel, time blocks sequential) ----
    rec_kernel = _make_rec_kernel(T_BLK, Bt, Hp, compute_dtype, unroll)

    def _rec_call(single_buffer):
        return pl.pallas_call(
            rec_kernel,
            out_shape=jax.ShapeDtypeStruct((Sp, Bp, Hp), compute_dtype),
            grid_spec=pltpu.PrefetchScalarGridSpec(
                num_scalar_prefetch=0,
                grid=(n_bt, n_blk),
                in_specs=[
                    pl.BlockSpec((T_BLK, Bt, 3 * Hp), lambda bt, tb: (tb, bt, 0)),  # Gi
                    _const_spec((Hp, 3 * Hp), lambda bt, tb: (0, 0), single_buffer),   # W_hh^T
                    _const_spec((1, Hp), lambda bt, tb: (0, 0), single_buffer),        # b_hn
                    _const_spec((Bt, Hp), lambda bt, tb: (bt, 0), single_buffer),      # h0
                ],
                out_specs=pl.BlockSpec((T_BLK, Bt, Hp), lambda bt, tb: (tb, bt, 0)),
                scratch_shapes=[pltpu.VMEM((Bt, Hp), jnp.float32)],                # carried h
            ),
            compiler_params=pltpu.CompilerParams(
                dimension_semantics=("parallel", "arbitrary"),
                vmem_limit_bytes=vmem_limit),
        )

    try:
        out_pad = _rec_call(True)(gi, whh_t, bhn, h0_p)
    except Exception:
        out_pad = _rec_call(False)(gi, whh_t, bhn, h0_p)

    # padded time steps / batch rows / lanes contain garbage by design; slice them off.
    out = out_pad[:S, :B, :H].astype(x.dtype)
    hn = out[-1:]                      # final hidden == last output step (1, B, H)
    return out, hn


# --------------------------------------------------------------------------- #
# pure-JAX reference (PyTorch GRU semantics, f32)
# --------------------------------------------------------------------------- #
def gru_reference(x, h0, w_ih, w_hh, b_ih, b_hh):
    H = h0.shape[-1]
    h = h0[0].astype(jnp.float32)
    outs = []
    for t in range(x.shape[0]):
        xt = x[t].astype(jnp.float32)
        gi = xt @ w_ih.T + b_ih
        gh = h @ w_hh.T + b_hh
        i_r, i_z, i_n = gi[:, :H], gi[:, H:2 * H], gi[:, 2 * H:]
        h_r, h_z, h_n = gh[:, :H], gh[:, H:2 * H], gh[:, 2 * H:]
        r = jax.nn.sigmoid(i_r + h_r)
        z = jax.nn.sigmoid(i_z + h_z)
        n = jnp.tanh(i_n + r * h_n)
        h = (1.0 - z) * n + z * h
        outs.append(h)
    return jnp.stack(outs, 0), h[None]


if __name__ == "__main__":
    seq, batch, input_size, hidden = 8, 8, 32, 32

    key = jax.random.PRNGKey(0)
    k_x, k_wih, k_whh, k_bih, k_bhh = jax.random.split(key, 5)

    scale = 1.0 / np.sqrt(hidden)
    x = jax.random.normal(k_x, (seq, batch, input_size), jnp.float32)
    h0 = jnp.zeros((1, batch, hidden), jnp.float32)          # RNN.init_hidden
    w_ih = jax.random.uniform(k_wih, (3 * hidden, input_size), jnp.float32, -scale, scale)
    w_hh = jax.random.uniform(k_whh, (3 * hidden, hidden), jnp.float32, -scale, scale)
    b_ih = jax.random.uniform(k_bih, (3 * hidden,), jnp.float32, -scale, scale)
    b_hh = jax.random.uniform(k_bhh, (3 * hidden,), jnp.float32, -scale, scale)

    out, hn = gru_forward(x, h0, w_ih, w_hh, b_ih, b_hh)
    jax.block_until_ready((out, hn))

    out_ref, hn_ref = gru_reference(x, h0, w_ih, w_hh, b_ih, b_hh)
    # bf16 MXU operands / bf16 output store with f32 accumulation -> loose-ish tolerance
    np.testing.assert_allclose(np.asarray(out), np.asarray(out_ref), rtol=2.5e-2, atol=2.5e-2)
    np.testing.assert_allclose(np.asarray(hn), np.asarray(hn_ref), rtol=2.5e-2, atol=2.5e-2)

    print("KERNEL_OK")
</pallas_src>

<mosaic_0001>
module attributes {stable_mosaic.version = 11 : i64} {
  func.func @_proj_kernel(%arg0: i32, %arg1: memref<64x32xbf16, #tpu.memory_space<vmem>>, %arg2: memref<32x384xbf16, #tpu.memory_space<vmem>>, %arg3: memref<1x384xf32, #tpu.memory_space<vmem>>, %arg4: memref<64x384xbf16, #tpu.memory_space<vmem>>) attributes {dimension_semantics = [#tpu.dimension_semantics<parallel>], iteration_bounds = array<i64: 1>, scalar_prefetch = 0 : i64, scratch_operands = 0 : i64, tpu.core_type = #tpu.core_type<tc>, window_params = [{transform_indices = @transform_0, window_bounds = array<i64: 64, 32>}, {pipeline_mode = #tpu.pipeline_mode<synchronous>, transform_indices = @transform_1, window_bounds = array<i64: 32, 384>}, {pipeline_mode = #tpu.pipeline_mode<synchronous>, transform_indices = @transform_2, window_bounds = array<i64: 1, 384>}, {transform_indices = @transform_3, window_bounds = array<i64: 64, 384>}]} {
    %c0 = arith.constant 0 : index
    %c0_0 = arith.constant 0 : index
    %0 = vector.load %arg1[%c0, %c0_0] : memref<64x32xbf16, #tpu.memory_space<vmem>>, vector<64x32xbf16>
    %c0_1 = arith.constant 0 : index
    %c0_2 = arith.constant 0 : index
    %1 = vector.load %arg2[%c0_1, %c0_2] : memref<32x384xbf16, #tpu.memory_space<vmem>>, vector<32x384xbf16>
    %cst = arith.constant dense<0.000000e+00> : vector<64x384xf32>
    %2 = tpu.matmul %0, %1, %cst {dimension_numbers = #tpu.dot_dimension_numbers<[1], [0], [0], [1], [0, 0, 1, 1], [], []>} : vector<64x32xbf16>, vector<32x384xbf16>, vector<64x384xf32> -> vector<64x384xf32>
    %c0_3 = arith.constant 0 : index
    %c0_4 = arith.constant 0 : index
    %3 = vector.load %arg3[%c0_3, %c0_4] : memref<1x384xf32, #tpu.memory_space<vmem>>, vector<1x384xf32>
    %4 = vector.broadcast %3 : vector<1x384xf32> to vector<64x384xf32>
    %5 = arith.addf %2, %4 : vector<64x384xf32>
    %6 = arith.truncf %5 : vector<64x384xf32> to vector<64x384xbf16>
    %c0_5 = arith.constant 0 : index
    %c0_6 = arith.constant 0 : index
    %7 = vector.load %arg4[%c0_5, %c0_6] : memref<64x384xbf16, #tpu.memory_space<vmem>>, vector<64x384xbf16>
    tpu.vector_store %arg4[%c0_5, %c0_6], %6 {strides = array<i32>} : memref<64x384xbf16, #tpu.memory_space<vmem>>, vector<64x384xbf16>,
    return
  }
  func.func @transform_0(%arg0: i32) -> (i32, i32) {
    %c0_i32 = arith.constant 0 : i32
    %c0_i32_0 = arith.constant 0 : i32
    return %arg0, %c0_i32 : i32, i32
  }
  func.func @transform_1(%arg0: i32) -> (i32, i32) {
    %c0_i32 = arith.constant 0 : i32
    %c0_i32_0 = arith.constant 0 : i32
    %c0_i32_1 = arith.constant 0 : i32
    return %c0_i32, %c0_i32_0 : i32, i32
  }
  func.func @transform_2(%arg0: i32) -> (i32, i32) {
    %c0_i32 = arith.constant 0 : i32
    %c0_i32_0 = arith.constant 0 : i32
    %c0_i32_1 = arith.constant 0 : i32
    return %c0_i32, %c0_i32_0 : i32, i32
  }
  func.func @transform_3(%arg0: i32) -> (i32, i32) {
    %c0_i32 = arith.constant 0 : i32
    %c0_i32_0 = arith.constant 0 : i32
    return %arg0, %c0_i32 : i32, i32
  }
}

module attributes {stable_mosaic.version = 11 : i64} {
  func.func @_proj_kernel(%arg0: i32, %arg1: memref<64x32xbf16, #tpu.memory_space<vmem>>, %arg2: memref<32x384xbf16, #tpu.memory_space<vmem>>, %arg3: memref<1x384xf32, #tpu.memory_space<vmem>>, %arg4: memref<64x384xbf16, #tpu.memory_space<vmem>>) attributes {dimension_semantics = [#tpu.dimension_semantics<parallel>], iteration_bounds = array<i64: 1>, scalar_prefetch = 0 : i64, scratch_operands = 0 : i64, tpu.core_type = #tpu.core_type<tc>, window_params = [{transform_indices = @transform_0, window_bounds = array<i64: 64, 32>}, {pipeline_mode = #tpu.pipeline_mode<synchronous>, transform_indices = @transform_1, window_bounds = array<i64: 32, 384>}, {pipeline_mode = #tpu.pipeline_mode<synchronous>, transform_indices = @transform_2, window_bounds = array<i64: 1, 384>}, {transform_indices = @transform_3, window_bounds = array<i64: 64, 384>}]} {
    %c0 = arith.constant 0 : index
    %c0_0 = arith.constant 0 : index
    %0 = vector.load %arg1[%c0, %c0_0] : memref<64x32xbf16, #tpu.memory_space<vmem>>, vector<64x32xbf16>
    %c0_1 = arith.constant 0 : index
    %c0_2 = arith.constant 0 : index
    %1 = vector.load %arg2[%c0_1, %c0_2] : memref<32x384xbf16, #tpu.memory_space<vmem>>, vector<32x384xbf16>
    %cst = arith.constant dense<0.000000e+00> : vector<64x384xf32>
    %2 = tpu.matmul %0, %1, %cst {dimension_numbers = #tpu.dot_dimension_numbers<[1], [0], [0], [1], [0, 0, 1, 1], [], []>} : vector<64x32xbf16>, vector<32x384xbf16>, vector<64x384xf32> -> vector<64x384xf32>
    %c0_3 = arith.constant 0 : index
    %c0_4 = arith.constant 0 : index
    %3 = vector.load %arg3[%c0_3, %c0_4] : memref<1x384xf32, #tpu.memory_space<vmem>>, vector<1x384xf32>
    %4 = vector.broadcast %3 : vector<1x384xf32> to vector<64x384xf32>
    %5 = arith.addf %2, %4 : vector<64x384xf32>
    %6 = arith.truncf %5 : vector<64x384xf32> to vector<64x384xbf16>
    %c0_5 = arith.constant 0 : index
    %c0_6 = arith.constant 0 : index
    %7 = vector.load %arg4[%c0_5, %c0_6] : memref<64x384xbf16, #tpu.memory_space<vmem>>, vector<64x384xbf16>
    tpu.vector_store %arg4[%c0_5, %c0_6], %6 {strides = array<i32>} : memref<64x384xbf16, #tpu.memory_space<vmem>>, vector<64x384xbf16>,
    return
  }
  func.func @transform_0(%arg0: i32) -> (i32, i32) {
    %c0_i32 = arith.constant 0 : i32
    %c0_i32_0 = arith.constant 0 : i32
    return %arg0, %c0_i32 : i32, i32
  }
  func.func @transform_1(%arg0: i32) -> (i32, i32) {
    %c0_i32 = arith.constant 0 : i32
    %c0_i32_0 = arith.constant 0 : i32
    %c0_i32_1 = arith.constant 0 : i32
    return %c0_i32, %c0_i32_0 : i32, i32
  }
  func.func @transform_2(%arg0: i32) -> (i32, i32) {
    %c0_i32 = arith.constant 0 : i32
    %c0_i32_0 = arith.constant 0 : i32
    %c0_i32_1 = arith.constant 0 : i32
    return %c0_i32, %c0_i32_0 : i32, i32
  }
  func.func @transform_3(%arg0: i32) -> (i32, i32) {
    %c0_i32 = arith.constant 0 : i32
    %c0_i32_0 = arith.constant 0 : i32
    return %arg0, %c0_i32 : i32, i32
  }
}

</mosaic_0001>

<llo_original>
// kernel: tpu_custom_call.1
$region0: #{tpu_custom_call.1}
  #allocation0 [shape = 'u32[]', space=smem, size = 0x4, offset = 0x4, fixed_abs, tag = 'smem constant byte address 0x4 - core index']
  #allocation1 [shape = 'u32[72,128]{1,0:T(1,128)}', space=vmem, size = 0x9000, scoped, tag = 'internal scratch']
  %s0 = inlined_call_operand.vmem [shape: bf16[64,32], index: 0, kind: input, shape index: {}]
  %s1 = inlined_call_operand.vmem [shape: bf16[32,384], index: 1, kind: input, shape index: {}]
  %s2 = inlined_call_operand.hbm [shape: f32[1,384], index: 2, kind: input, shape index: {}]
  %s3 = inlined_call_operand.hbm [shape: bf16[64,384], index: 3, kind: output, shape index: {}]
  %s4 = sld [smem:[#allocation0]]
  $region26: #{tpu_custom_call.1} parent=0
    _
  %s6 = ssub.s32 1, %s4
  %s7 = scalar_select 0, %s6, %s4
  $region1: #{tpu_custom_call.1} parent=0
    #allocation2 [shape = 'u8[1536]{0}', space=vmem, size = 0x800, scoped, tag = 'input window, operand 2, single buffered']
    #allocation3 [shape = 's32[1]{0}', space=sflag, size = 0x4, scoped, tag = 'scoped memory for tpu_custom_call.1']
    #allocation4 [shape = 's32[1]{0}', space=sflag, size = 0x4, scoped, tag = 'scoped memory for tpu_custom_call.1']
    #allocation5 [shape = 'u8[49152]{0}', space=vmem, size = 0xc000, scoped, tag = 'output window, operand 0, single buffered']
    %8 = vsyncpa [#allocation3], 0
    %9 = vsyncpa [#allocation4], 0
    // Predicated region
    $region2: #{tpu_custom_call.1} parent=1 // pred_check
      _
    $region3: #{tpu_custom_call.1} parent=1 // pred_check_branch
      %11 = sbr.rel (0) target = $region5
    $region4: #{tpu_custom_call.1} parent=1 // pred_region
      _
    $region5: #{tpu_custom_call.1} parent=1 // pred_fallthru
      _
    // Predicated region
    $region6: #{tpu_custom_call.1} parent=1 // pred_check
      _
    $region7: #{tpu_custom_call.1} parent=1 // pred_check_branch
      %13 = sbr.rel (0) target = $region9
    $region8: #{tpu_custom_call.1} parent=1 // pred_region
      _
    $region9: #{tpu_custom_call.1} parent=1 // pred_fallthru
      _
    // Predicated region
    $region10: #{tpu_custom_call.1} parent=1 // pred_check
      _
    $region11: #{tpu_custom_call.1} parent=1 // pred_check_branch
      %15 = sbr.rel (0) target = $region13
    $region12: #{tpu_custom_call.1} parent=1 // pred_region
      %17 = vsyncadd [#allocation3], 0
      %s19 = sshll.u32 %s2, 4
      %s20 = int_to_ptr.hbm [resolvable:$true] %s19
      %s21 = sshll.u32 [#allocation2], 4
      %s22 = int_to_ptr.vmem [resolvable:$true] %s21
      %24 = dma.hbm_to_vmem [thread:$0]  %s20, 48, %s22, [#allocation3]
    $region13: #{tpu_custom_call.1} parent=1 // pred_fallthru
      _
    // Predicated region
    $region14: #{tpu_custom_call.1} parent=1 // pred_check
      _
    $region15: #{tpu_custom_call.1} parent=1 // pred_check_branch
      %26 = sbr.rel (0) target = $region17
    $region16: #{tpu_custom_call.1} parent=1 // pred_region
      %28 = dma.done [#allocation3], 48
    $region17: #{tpu_custom_call.1} parent=1 // pred_fallthru
      _
    %v30 = vld [vmem:[%s0] sm:$0xf]
    %v31 = vld [vmem:[%s0 + $0x4] sm:$0xf]
    %v32 = vld [vmem:[%s0 + $0x8] sm:$0xf]
    %v33 = vld [vmem:[%s0 + $0xc] sm:$0xf]
    %v34 = vld [vmem:[%s0 + $0x10] sm:$0xf]
    %v35 = vld [vmem:[%s0 + $0x14] sm:$0xf]
    %v36 = vld [vmem:[%s0 + $0x18] sm:$0xf]
    %v37 = vld [vmem:[%s0 + $0x1c] sm:$0xf]
    %v38 = vld [vmem:[%s1] sm:$0xff]
    %v39 = vld [vmem:[%s1 + $0x8] sm:$0xf]
    %v40 = vld [vmem:[%s1 + $0xc] sm:$0xff]
    %v41 = vld [vmem:[%s1 + $0x14] sm:$0xf]
    %v42 = vld [vmem:[%s1 + $0x18] sm:$0xff]
    %v43 = vld [vmem:[%s1 + $0x20] sm:$0xf]
    %v44 = vld [vmem:[%s1 + $0x24] sm:$0xff]
    %v45 = vld [vmem:[%s1 + $0x2c] sm:$0xf]
    %v46 = vld [vmem:[#allocation2] sm:$0x7]
    %v48 = vperm.slane %v46, 0
    %v49 = vperm.slane %v46, 1
    %v50 = vperm.slane %v46, 2
    %v62 = vunpack.c.l.b16 %v30
    %v63 = vunpack.c.l.b16 %v31
    %v64 = vunpack.c.l.b16 %v32
    %v65 = vunpack.c.l.b16 %v33
    %v66 = vunpack.c.l.b16 %v34
    %v67 = vunpack.c.l.b16 %v35
    %v68 = vunpack.c.l.b16 %v36
    %v69 = vunpack.c.l.b16 %v37
    %v70 = vpack.c.b16 %v63, %v62
    %v71 = vpack.c.b16 %v65, %v64
    %v72 = vpack.c.b16 %v67, %v66
    %v73 = vpack.c.b16 %v69, %v68
    %v82 = vunpack.c.l.b16 %v38
    %v83 = vunpack.c.h.b16 %v38
    %v84 = vunpack.c.l.b16 %v39
    %v85 = vunpack.c.l.b16 %v40
    %v86 = vunpack.c.h.b16 %v40
    %v87 = vunpack.c.l.b16 %v41
    %v88 = vunpack.c.l.b16 %v42
    %v89 = vunpack.c.h.b16 %v42
    %v90 = vunpack.c.l.b16 %v43
    %v91 = vunpack.c.l.b16 %v44
    %v92 = vunpack.c.h.b16 %v44
    %v93 = vunpack.c.l.b16 %v45
    %v94 = vpack.c.b16 %v85, %v82
    %v95 = vpack.c.b16 %v86, %v83
    %v96 = vpack.c.b16 %v87, %v84
    %v97 = vpack.c.b16 %v91, %v88
    %v98 = vpack.c.b16 %v92, %v89
    %v99 = vpack.c.b16 %v93, %v90
    %vm106 = vcmask 261120
    %v108 = vsel %vm106, %v70, 0
    %v111 = vsel %vm106, %v71, 0
    %v114 = vsel %vm106, %v72, 0
    %v117 = vsel %vm106, %v73, 0
    %119 = vmatpush.bf16.msra.mxu0 0
    %120 = vmatpush.bf16.msra.mxu0 0
    %121 = vmatpush.bf16.msra.mxu0 0
    %122 = vmatpush.bf16.msra.mxu0 0
    %123 = vmatpush.bf16.msra.mxu0 0
    %124 = vmatpush.bf16.msra.mxu0 0
    %125 = vmatpush.bf16.msra.mxu0 %v97
    %126 = vmatpush.bf16.msra.mxu0 %v94
    %127 = vmatmul.bf16.gmra.mxu0 %v108
    %v128 = vpop.f32.mrf.mxu0
    %v129 = vadd.f32 %v48, %v128
    %v130 = vpop.f32.mrf.mxu0
    %v131 = vadd.f32 %v48, %v130
    %132 = vmatmul.bf16.gmra.mxu0 %v111
    %v133 = vpop.f32.mrf.mxu0
    %v134 = vadd.f32 %v48, %v133
    %v135 = vpop.f32.mrf.mxu0
    %v136 = vadd.f32 %v48, %v135
    %137 = vmatmul.bf16.gmra.mxu0 %v114
    %v138 = vpop.f32.mrf.mxu0
    %v139 = vadd.f32 %v48, %v138
    %v140 = vpop.f32.mrf.mxu0
    %v141 = vadd.f32 %v48, %v140
    %142 = vmatmul.bf16.gmra.mxu0 %v117
    %v143 = vpop.f32.mrf.mxu0
    %v144 = vadd.f32 %v48, %v143
    %v145 = vpop.f32.mrf.mxu0
    %v146 = vadd.f32 %v48, %v145
    %147 = vdwg.mxu0
    %148 = vmatpush.bf16.msra.mxu0 0
    %149 = vmatpush.bf16.msra.mxu0 0
    %150 = vmatpush.bf16.msra.mxu0 0
    %151 = vmatpush.bf16.msra.mxu0 0
    %152 = vmatpush.bf16.msra.mxu0 0
    %153 = vmatpush.bf16.msra.mxu0 0
    %154 = vmatpush.bf16.msra.mxu0 %v98
    %155 = vmatpush.bf16.msra.mxu0 %v95
    %156 = vmatmul.bf16.gmra.mxu0 %v108
    %v157 = vpop.f32.mrf.mxu0
    %v158 = vadd.f32 %v49, %v157
    %v159 = vpop.f32.mrf.mxu0
    %v160 = vadd.f32 %v49, %v159
    %161 = vmatmul.bf16.gmra.mxu0 %v111
    %v162 = vpop.f32.mrf.mxu0
    %v163 = vadd.f32 %v49, %v162
    %v164 = vpop.f32.mrf.mxu0
    %v165 = vadd.f32 %v49, %v164
    %166 = vmatmul.bf16.gmra.mxu0 %v114
    %v167 = vpop.f32.mrf.mxu0
    %v168 = vadd.f32 %v49, %v167
    %v169 = vpop.f32.mrf.mxu0
    %v170 = vadd.f32 %v49, %v169
    %171 = vmatmul.bf16.gmra.mxu0 %v117
    %v172 = vpop.f32.mrf.mxu0
    %v173 = vadd.f32 %v49, %v172
    %v174 = vpop.f32.mrf.mxu0
    %v175 = vadd.f32 %v49, %v174
    %176 = vdwg.mxu0
    %177 = vmatpush.bf16.msra.mxu0 0
    %178 = vmatpush.bf16.msra.mxu0 0
    %179 = vmatpush.bf16.msra.mxu0 0
    %180 = vmatpush.bf16.msra.mxu0 0
    %181 = vmatpush.bf16.msra.mxu0 0
    %182 = vmatpush.bf16.msra.mxu0 0
    %183 = vmatpush.bf16.msra.mxu0 %v99
    %184 = vmatpush.bf16.msra.mxu0 %v96
    %185 = vmatmul.bf16.gmra.mxu0 %v108
    %v186 = vpop.f32.mrf.mxu0
    %v187 = vadd.f32 %v50, %v186
    %v188 = vpop.f32.mrf.mxu0
    %v189 = vadd.f32 %v50, %v188
    %190 = vmatmul.bf16.gmra.mxu0 %v111
    %v191 = vpop.f32.mrf.mxu0
    %v192 = vadd.f32 %v50, %v191
    %v193 = vpop.f32.mrf.mxu0
    %v194 = vadd.f32 %v50, %v193
    %195 = vmatmul.bf16.gmra.mxu0 %v114
    %v196 = vpop.f32.mrf.mxu0
    %v197 = vadd.f32 %v50, %v196
    %v198 = vpop.f32.mrf.mxu0
    %v199 = vadd.f32 %v50, %v198
    %200 = vmatmul.bf16.gmra.mxu0 %v117
    %v201 = vpop.f32.mrf.mxu0
    %v202 = vadd.f32 %v50, %v201
    %v203 = vpop.f32.mrf.mxu0
    %v204 = vadd.f32 %v50, %v203
    %205 = vdwg.mxu0
    %v206 = vpack.c.bf16 %v158, %v129
    %v207 = vpack.c.bf16 %v187, %v187
    %v208 = vpack.c.bf16 %v160, %v131
    %v209 = vpack.c.bf16 %v189, %v189
    %v210 = vpack.c.bf16 %v163, %v134
    %v211 = vpack.c.bf16 %v192, %v192
    %v212 = vpack.c.bf16 %v165, %v136
    %v213 = vpack.c.bf16 %v194, %v194
    %v214 = vpack.c.bf16 %v168, %v139
    %v215 = vpack.c.bf16 %v197, %v197
    %v216 = vpack.c.bf16 %v170, %v141
    %v217 = vpack.c.bf16 %v199, %v199
    %v218 = vpack.c.bf16 %v173, %v144
    %v219 = vpack.c.bf16 %v202, %v202
    %v220 = vpack.c.bf16 %v175, %v146
    %v221 = vpack.c.bf16 %v204, %v204
    %222 = vst [vmem:[#allocation5] sm:$0xff] %v206
    %223 = vst [vmem:[#allocation5 + $0x8] sm:$0xf] %v207
    %224 = vst [vmem:[#allocation5 + $0xc] sm:$0xff] %v208
    %225 = vst [vmem:[#allocation5 + $0x14] sm:$0xf] %v209
    %226 = vst [vmem:[#allocation5 + $0x18] sm:$0xff] %v210
    %227 = vst [vmem:[#allocation5 + $0x20] sm:$0xf] %v211
    %228 = vst [vmem:[#allocation5 + $0x24] sm:$0xff] %v212
    %229 = vst [vmem:[#allocation5 + $0x2c] sm:$0xf] %v213
    %230 = vst [vmem:[#allocation5 + $0x30] sm:$0xff] %v214
    %231 = vst [vmem:[#allocation5 + $0x38] sm:$0xf] %v215
    %232 = vst [vmem:[#allocation5 + $0x3c] sm:$0xff] %v216
    %233 = vst [vmem:[#allocation5 + $0x44] sm:$0xf] %v217
    %234 = vst [vmem:[#allocation5 + $0x48] sm:$0xff] %v218
    %235 = vst [vmem:[#allocation5 + $0x50] sm:$0xf] %v219
    %236 = vst [vmem:[#allocation5 + $0x54] sm:$0xff] %v220
    %237 = vst [vmem:[#allocation5 + $0x5c] sm:$0xf] %v221
    // Predicated region
    $region18: #{tpu_custom_call.1} parent=1 // pred_check
      _
    $region19: #{tpu_custom_call.1} parent=1 // pred_check_branch
      %239 = sbr.rel (0) target = $region21
    $region20: #{tpu_custom_call.1} parent=1 // pred_region
      %241 = vsyncadd [#allocation4], 0
      %s242 = sshll.u32 [#allocation5], 4
      %s243 = int_to_ptr.vmem [resolvable:$true] %s242
      %s244 = sshll.u32 %s3, 4
      %s245 = int_to_ptr.hbm [resolvable:$true] %s244
      %250 = dma.vmem_to_hbm [thread:$0]  %s243, 1536, %s245, [#allocation4], 192, 192, 12
    $region21: #{tpu_custom_call.1} parent=1 // pred_fallthru
      _
    // Predicated region
    $region22: #{tpu_custom_call.1} parent=1 // pred_check
      _
    $region23: #{tpu_custom_call.1} parent=1 // pred_check_branch
      %252 = sbr.rel (0) target = $region25
    $region24: #{tpu_custom_call.1} parent=1 // pred_region
      %254 = dma.done [#allocation4], 1536
    $region25: #{tpu_custom_call.1} parent=1 // pred_fallthru
      _
    %255 = vsyncpa [#allocation3], 1
    %256 = vsyncpa [#allocation4], 1

// kernel: tpu_custom_call.1
$region0: #{tpu_custom_call.1}
  #allocation0 [shape = 'u32[]', space=smem, size = 0x4, offset = 0x4, fixed_abs, tag = 'smem constant byte address 0x4 - core index']
  #allocation1 [shape = 'u32[72,128]{1,0:T(1,128)}', space=vmem, size = 0x9000, scoped, tag = 'internal scratch']
  %s0 = inlined_call_operand.vmem [shape: bf16[64,32], index: 0, kind: input, shape index: {}]
  %s1 = inlined_call_operand.vmem [shape: bf16[32,384], index: 1, kind: input, shape index: {}]
  %s2 = inlined_call_operand.hbm [shape: f32[1,384], index: 2, kind: input, shape index: {}]
  %s3 = inlined_call_operand.hbm [shape: bf16[64,384], index: 3, kind: output, shape index: {}]
  %s4 = sld [smem:[#allocation0]]
  $region26: #{tpu_custom_call.1} parent=0
    _
  %s6 = ssub.s32 1, %s4
  %s7 = scalar_select 0, %s6, %s4
  $region1: #{tpu_custom_call.1} parent=0
    #allocation2 [shape = 'u8[1536]{0}', space=vmem, size = 0x800, scoped, tag = 'input window, operand 2, single buffered']
    #allocation3 [shape = 's32[1]{0}', space=sflag, size = 0x4, scoped, tag = 'scoped memory for tpu_custom_call.1']
    #allocation4 [shape = 's32[1]{0}', space=sflag, size = 0x4, scoped, tag = 'scoped memory for tpu_custom_call.1']
    #allocation5 [shape = 'u8[49152]{0}', space=vmem, size = 0xc000, scoped, tag = 'output window, operand 0, single buffered']
    %8 = vsyncpa [#allocation3], 0
    %9 = vsyncpa [#allocation4], 0
    // Predicated region
    $region2: #{tpu_custom_call.1} parent=1 // pred_check
      _
    $region3: #{tpu_custom_call.1} parent=1 // pred_check_branch
      %11 = sbr.rel (0) target = $region5
    $region4: #{tpu_custom_call.1} parent=1 // pred_region
      _
    $region5: #{tpu_custom_call.1} parent=1 // pred_fallthru
      _
    // Predicated region
    $region6: #{tpu_custom_call.1} parent=1 // pred_check
      _
    $region7: #{tpu_custom_call.1} parent=1 // pred_check_branch
      %13 = sbr.rel (0) target = $region9
    $region8: #{tpu_custom_call.1} parent=1 // pred_region
      _
    $region9: #{tpu_custom_call.1} parent=1 // pred_fallthru
      _
    // Predicated region
    $region10: #{tpu_custom_call.1} parent=1 // pred_check
      _
    $region11: #{tpu_custom_call.1} parent=1 // pred_check_branch
      %15 = sbr.rel (0) target = $region13
    $region12: #{tpu_custom_call.1} parent=1 // pred_region
      %17 = vsyncadd [#allocation3], 0
      %s19 = sshll.u32 %s2, 4
      %s20 = int_to_ptr.hbm [resolvable:$true] %s19
      %s21 = sshll.u32 [#allocation2], 4
      %s22 = int_to_ptr.vmem [resolvable:$true] %s21
      %24 = dma.hbm_to_vmem [thread:$0]  %s20, 48, %s22, [#allocation3]
    $region13: #{tpu_custom_call.1} parent=1 // pred_fallthru
      _
    // Predicated region
    $region14: #{tpu_custom_call.1} parent=1 // pred_check
      _
    $region15: #{tpu_custom_call.1} parent=1 // pred_check_branch
      %26 = sbr.rel (0) target = $region17
    $region16: #{tpu_custom_call.1} parent=1 // pred_region
      %28 = dma.done [#allocation3], 48
    $region17: #{tpu_custom_call.1} parent=1 // pred_fallthru
      _
    %v30 = vld [vmem:[%s0] sm:$0xf]
    %v31 = vld [vmem:[%s0 + $0x4] sm:$0xf]
    %v32 = vld [vmem:[%s0 + $0x8] sm:$0xf]
    %v33 = vld [vmem:[%s0 + $0xc] sm:$0xf]
    %v34 = vld [vmem:[%s0 + $0x10] sm:$0xf]
    %v35 = vld [vmem:[%s0 + $0x14] sm:$0xf]
    %v36 = vld [vmem:[%s0 + $0x18] sm:$0xf]
    %v37 = vld [vmem:[%s0 + $0x1c] sm:$0xf]
    %v38 = vld [vmem:[%s1] sm:$0xff]
    %v39 = vld [vmem:[%s1 + $0x8] sm:$0xf]
    %v40 = vld [vmem:[%s1 + $0xc] sm:$0xff]
    %v41 = vld [vmem:[%s1 + $0x14] sm:$0xf]
    %v42 = vld [vmem:[%s1 + $0x18] sm:$0xff]
    %v43 = vld [vmem:[%s1 + $0x20] sm:$0xf]
    %v44 = vld [vmem:[%s1 + $0x24] sm:$0xff]
    %v45 = vld [vmem:[%s1 + $0x2c] sm:$0xf]
    %v46 = vld [vmem:[#allocation2] sm:$0x7]
    %v48 = vperm.slane %v46, 0
    %v49 = vperm.slane %v46, 1
    %v50 = vperm.slane %v46, 2
    %v62 = vunpack.c.l.b16 %v30
    %v63 = vunpack.c.l.b16 %v31
    %v64 = vunpack.c.l.b16 %v32
    %v65 = vunpack.c.l.b16 %v33
    %v66 = vunpack.c.l.b16 %v34
    %v67 = vunpack.c.l.b16 %v35
    %v68 = vunpack.c.l.b16 %v36
    %v69 = vunpack.c.l.b16 %v37
    %v70 = vpack.c.b16 %v63, %v62
    %v71 = vpack.c.b16 %v65, %v64
    %v72 = vpack.c.b16 %v67, %v66
    %v73 = vpack.c.b16 %v69, %v68
    %v82 = vunpack.c.l.b16 %v38
    %v83 = vunpack.c.h.b16 %v38
    %v84 = vunpack.c.l.b16 %v39
    %v85 = vunpack.c.l.b16 %v40
    %v86 = vunpack.c.h.b16 %v40
    %v87 = vunpack.c.l.b16 %v41
    %v88 = vunpack.c.l.b16 %v42
    %v89 = vunpack.c.h.b16 %v42
    %v90 = vunpack.c.l.b16 %v43
    %v91 = vunpack.c.l.b16 %v44
    %v92 = vunpack.c.h.b16 %v44
    %v93 = vunpack.c.l.b16 %v45
    %v94 = vpack.c.b16 %v85, %v82
    %v95 = vpack.c.b16 %v86, %v83
    %v96 = vpack.c.b16 %v87, %v84
    %v97 = vpack.c.b16 %v91, %v88
    %v98 = vpack.c.b16 %v92, %v89
    %v99 = vpack.c.b16 %v93, %v90
    %vm106 = vcmask 261120
    %v108 = vsel %vm106, %v70, 0
    %v111 = vsel %vm106, %v71, 0
    %v114 = vsel %vm106, %v72, 0
    %v117 = vsel %vm106, %v73, 0
    %119 = vmatpush.bf16.msra.mxu0 0
    %120 = vmatpush.bf16.msra.mxu0 0
    %121 = vmatpush.bf16.msra.mxu0 0
    %122 = vmatpush.bf16.msra.mxu0 0
    %123 = vmatpush.bf16.msra.mxu0 0
    %124 = vmatpush.bf16.msra.mxu0 0
    %125 = vmatpush.bf16.msra.mxu0 %v97
    %126 = vmatpush.bf16.msra.mxu0 %v94
    %127 = vmatmul.bf16.gmra.mxu0 %v108
    %v128 = vpop.f32.mrf.mxu0
    %v129 = vadd.f32 %v48, %v128
    %v130 = vpop.f32.mrf.mxu0
    %v131 = vadd.f32 %v48, %v130
    %132 = vmatmul.bf16.gmra.mxu0 %v111
    %v133 = vpop.f32.mrf.mxu0
    %v134 = vadd.f32 %v48, %v133
    %v135 = vpop.f32.mrf.mxu0
    %v136 = vadd.f32 %v48, %v135
    %137 = vmatmul.bf16.gmra.mxu0 %v114
    %v138 = vpop.f32.mrf.mxu0
    %v139 = vadd.f32 %v48, %v138
    %v140 = vpop.f32.mrf.mxu0
    %v141 = vadd.f32 %v48, %v140
    %142 = vmatmul.bf16.gmra.mxu0 %v117
    %v143 = vpop.f32.mrf.mxu0
    %v144 = vadd.f32 %v48, %v143
    %v145 = vpop.f32.mrf.mxu0
    %v146 = vadd.f32 %v48, %v145
    %147 = vdwg.mxu0
    %148 = vmatpush.bf16.msra.mxu0 0
    %149 = vmatpush.bf16.msra.mxu0 0
    %150 = vmatpush.bf16.msra.mxu0 0
    %151 = vmatpush.bf16.msra.mxu0 0
    %152 = vmatpush.bf16.msra.mxu0 0
    %153 = vmatpush.bf16.msra.mxu0 0
    %154 = vmatpush.bf16.msra.mxu0 %v98
    %155 = vmatpush.bf16.msra.mxu0 %v95
    %156 = vmatmul.bf16.gmra.mxu0 %v108
    %v157 = vpop.f32.mrf.mxu0
    %v158 = vadd.f32 %v49, %v157
    %v159 = vpop.f32.mrf.mxu0
    %v160 = vadd.f32 %v49, %v159
    %161 = vmatmul.bf16.gmra.mxu0 %v111
    %v162 = vpop.f32.mrf.mxu0
    %v163 = vadd.f32 %v49, %v162
    %v164 = vpop.f32.mrf.mxu0
    %v165 = vadd.f32 %v49, %v164
    %166 = vmatmul.bf16.gmra.mxu0 %v114
    %v167 = vpop.f32.mrf.mxu0
    %v168 = vadd.f32 %v49, %v167
    %v169 = vpop.f32.mrf.mxu0
    %v170 = vadd.f32 %v49, %v169
    %171 = vmatmul.bf16.gmra.mxu0 %v117
    %v172 = vpop.f32.mrf.mxu0
    %v173 = vadd.f32 %v49, %v172
    %v174 = vpop.f32.mrf.mxu0
    %v175 = vadd.f32 %v49, %v174
    %176 = vdwg.mxu0
    %177 = vmatpush.bf16.msra.mxu0 0
    %178 = vmatpush.bf16.msra.mxu0 0
    %179 = vmatpush.bf16.msra.mxu0 0
    %180 = vmatpush.bf16.msra.mxu0 0
    %181 = vmatpush.bf16.msra.mxu0 0
    %182 = vmatpush.bf16.msra.mxu0 0
    %183 = vmatpush.bf16.msra.mxu0 %v99
    %184 = vmatpush.bf16.msra.mxu0 %v96
    %185 = vmatmul.bf16.gmra.mxu0 %v108
    %v186 = vpop.f32.mrf.mxu0
    %v187 = vadd.f32 %v50, %v186
    %v188 = vpop.f32.mrf.mxu0
    %v189 = vadd.f32 %v50, %v188
    %190 = vmatmul.bf16.gmra.mxu0 %v111
    %v191 = vpop.f32.mrf.mxu0
    %v192 = vadd.f32 %v50, %v191
    %v193 = vpop.f32.mrf.mxu0
    %v194 = vadd.f32 %v50, %v193
    %195 = vmatmul.bf16.gmra.mxu0 %v114
    %v196 = vpop.f32.mrf.mxu0
    %v197 = vadd.f32 %v50, %v196
    %v198 = vpop.f32.mrf.mxu0
    %v199 = vadd.f32 %v50, %v198
    %200 = vmatmul.bf16.gmra.mxu0 %v117
    %v201 = vpop.f32.mrf.mxu0
    %v202 = vadd.f32 %v50, %v201
    %v203 = vpop.f32.mrf.mxu0
    %v204 = vadd.f32 %v50, %v203
    %205 = vdwg.mxu0
    %v206 = vpack.c.bf16 %v158, %v129
    %v207 = vpack.c.bf16 %v187, %v187
    %v208 = vpack.c.bf16 %v160, %v131
    %v209 = vpack.c.bf16 %v189, %v189
    %v210 = vpack.c.bf16 %v163, %v134
    %v211 = vpack.c.bf16 %v192, %v192
    %v212 = vpack.c.bf16 %v165, %v136
    %v213 = vpack.c.bf16 %v194, %v194
    %v214 = vpack.c.bf16 %v168, %v139
    %v215 = vpack.c.bf16 %v197, %v197
    %v216 = vpack.c.bf16 %v170, %v141
    %v217 = vpack.c.bf16 %v199, %v199
    %v218 = vpack.c.bf16 %v173, %v144
    %v219 = vpack.c.bf16 %v202, %v202
    %v220 = vpack.c.bf16 %v175, %v146
    %v221 = vpack.c.bf16 %v204, %v204
    %222 = vst [vmem:[#allocation5] sm:$0xff] %v206
    %223 = vst [vmem:[#allocation5 + $0x8] sm:$0xf] %v207
    %224 = vst [vmem:[#allocation5 + $0xc] sm:$0xff] %v208
    %225 = vst [vmem:[#allocation5 + $0x14] sm:$0xf] %v209
    %226 = vst [vmem:[#allocation5 + $0x18] sm:$0xff] %v210
    %227 = vst [vmem:[#allocation5 + $0x20] sm:$0xf] %v211
    %228 = vst [vmem:[#allocation5 + $0x24] sm:$0xff] %v212
    %229 = vst [vmem:[#allocation5 + $0x2c] sm:$0xf] %v213
    %230 = vst [vmem:[#allocation5 + $0x30] sm:$0xff] %v214
    %231 = vst [vmem:[#allocation5 + $0x38] sm:$0xf] %v215
    %232 = vst [vmem:[#allocation5 + $0x3c] sm:$0xff] %v216
    %233 = vst [vmem:[#allocation5 + $0x44] sm:$0xf] %v217
    %234 = vst [vmem:[#allocation5 + $0x48] sm:$0xff] %v218
    %235 = vst [vmem:[#allocation5 + $0x50] sm:$0xf] %v219
    %236 = vst [vmem:[#allocation5 + $0x54] sm:$0xff] %v220
    %237 = vst [vmem:[#allocation5 + $0x5c] sm:$0xf] %v221
    // Predicated region
    $region18: #{tpu_custom_call.1} parent=1 // pred_check
      _
    $region19: #{tpu_custom_call.1} parent=1 // pred_check_branch
      %239 = sbr.rel (0) target = $region21
    $region20: #{tpu_custom_call.1} parent=1 // pred_region
      %241 = vsyncadd [#allocation4], 0
      %s242 = sshll.u32 [#allocation5], 4
      %s243 = int_to_ptr.vmem [resolvable:$true] %s242
      %s244 = sshll.u32 %s3, 4
      %s245 = int_to_ptr.hbm [resolvable:$true] %s244
      %250 = dma.vmem_to_hbm [thread:$0]  %s243, 1536, %s245, [#allocation4], 192, 192, 12
    $region21: #{tpu_custom_call.1} parent=1 // pred_fallthru
      _
    // Predicated region
    $region22: #{tpu_custom_call.1} parent=1 // pred_check
      _
    $region23: #{tpu_custom_call.1} parent=1 // pred_check_branch
      %252 = sbr.rel (0) target = $region25
    $region24: #{tpu_custom_call.1} parent=1 // pred_region
      %254 = dma.done [#allocation4], 1536
    $region25: #{tpu_custom_call.1} parent=1 // pred_fallthru
      _
    %255 = vsyncpa [#allocation3], 1
    %256 = vsyncpa [#allocation4], 1

</llo_original>
